<compile_context>
chip_gen: v5e
topology: v5e:2x2
jax: 0.10.0
libtpu: 0.0.40
codegen_flags: <defaults>
</compile_context>

<pallas_src>
import functools
import math

import jax
import jax.numpy as jnp
from jax import lax
from jax.experimental import pallas as pl
from jax.experimental.pallas import tpu as pltpu


def _round_up(x, m):
    return ((x + m - 1) // m) * m


# --------------------------- Pass 1: cross-attention -------------------------
def _attention_kernel(q_ref, enc_ref, mask_ref, ctx_ref, *, scale):
    """grid = (B,). Single-head cross-attention for one batch element.

    q_ref    : (T_pad, D)  bf16   decoder queries (embedded prev tokens)
    enc_ref  : (S_pad, D)  bf16   encoder_out (keys == values)
    mask_ref : (1, S_pad)  f32    encoder_padding_mask (1.0 => pad)
    ctx_ref  : (T_pad, D)  bf16   attention context (output)
    """
    q = q_ref[...]                                   # (T_pad, D) bf16
    k = enc_ref[...]                                 # (S_pad, D) bf16

    # scores (T_pad, S_pad): contract over D on the MXU, f32 accumulation.
    scores = lax.dot_general(
        q, k, (((1,), (1,)), ((), ())),
        preferred_element_type=jnp.float32) * scale

    # encoder padding mask (1.0 => pad) -> -inf before softmax.
    mask = mask_ref[...]                             # (1, S_pad), broadcasts over T
    scores = jnp.where(mask > 0.5, jnp.float32(-1e30), scores)

    # numerically-stable softmax over source positions, f32 math.
    m = jnp.max(scores, axis=-1, keepdims=True)
    p = jnp.exp(scores - m)
    denom = jnp.sum(p, axis=-1, keepdims=True)
    attn = p * pl.reciprocal(denom, approx=True)     # (T_pad, S_pad)

    # context (T_pad, D): contract over S (values == encoder_out).
    ctx = lax.dot_general(
        attn.astype(jnp.bfloat16), k, (((1,), (0,)), ((), ())),
        preferred_element_type=jnp.float32)
    ctx_ref[...] = ctx.astype(ctx_ref.dtype)


# --------------------------- Pass 2: vocab projection ------------------------
def _projection_kernel(ctx_ref, w_ref, out_ref):
    """grid = (n_vtiles,). (M, D) @ (D, tn) -> (M, tn) logits tile.

    ctx_ref : (M, D)  bf16  block index constant across the grid -> stays
                            VMEM-resident (DMA'd once, batch folded into M).
    w_ref   : (D, tn) bf16  one vocab tile of w_out; streamed exactly once.
    out_ref : (M, tn) f32   logits tile (lane-dense, tn % 128 == 0).
    """
    out_ref[...] = lax.dot_general(
        ctx_ref[...], w_ref[...], (((1,), (0,)), ((), ())),
        preferred_element_type=jnp.float32)


def incremental_decoder_forward(prev_output_tokens, encoder_out,
                                encoder_padding_mask, params,
                                incremental_state=None, tn=2048):
    """Concrete IncrementalDecoder.forward.

    prev_output_tokens   : (B, T)    int32 token ids
    encoder_out          : (B, S, D) float32
    encoder_padding_mask : (B, S)    bool (True = pad)
    params               : dict with 'embed' (V, D) and 'w_out' (D, V)
    returns logits (B, T, V) float32
    """
    # TODO(synk): incremental_state caching not supported in this kernel.
    del incremental_state

    B, T = prev_output_tokens.shape
    _, S, D = encoder_out.shape
    V = params["w_out"].shape[1]

    # Lane / sublane alignment.
    T_pad = _round_up(T, 16)                    # bf16 sublane packing
    S_pad = _round_up(S, 128)                   # lane-dense scores / reductions
    V128 = _round_up(V, 128)
    tn = _round_up(min(tn, V128), 128)          # vocab tile, multiple of 128
    V_pad = _round_up(V128, tn)                 # minimal vocab padding
    n_vtiles = V_pad // tn
    M = B * T_pad                               # batch folded into matmul M dim

    # --- JAX glue: embedding gather + padding + bf16 casts -------------------
    queries = jnp.take(params["embed"], prev_output_tokens, axis=0)   # (B, T, D)
    queries = jnp.pad(queries, ((0, 0), (0, T_pad - T), (0, 0)))
    queries = queries.astype(jnp.bfloat16)

    enc = jnp.pad(encoder_out, ((0, 0), (0, S_pad - S), (0, 0)))
    enc = enc.astype(jnp.bfloat16)

    # Padding mask (1.0 = pad); padded source positions marked as pad.
    mask = jnp.pad(encoder_padding_mask.astype(jnp.float32),
                   ((0, 0), (0, S_pad - S)), constant_values=1.0)
    mask = mask.reshape(B, 1, S_pad)

    w_out = jnp.pad(params["w_out"], ((0, 0), (0, V_pad - V)))
    w_out = w_out.astype(jnp.bfloat16)

    scale = 1.0 / math.sqrt(D)

    # --- Pass 1: attention, grid over batch ----------------------------------
    attn_cost = pl.CostEstimate(
        flops=int(4 * B * T_pad * S_pad * D),
        transcendentals=int(B * T_pad * S_pad),
        bytes_accessed=int(2 * (B * T_pad * D + B * S_pad * D + B * T_pad * D)
                           + 4 * B * S_pad))

    ctx = pl.pallas_call(
        functools.partial(_attention_kernel, scale=scale),
        out_shape=jax.ShapeDtypeStruct((B, T_pad, D), jnp.bfloat16),
        grid_spec=pltpu.PrefetchScalarGridSpec(
            num_scalar_prefetch=0,
            grid=(B,),
            in_specs=[
                pl.BlockSpec((pl.Squeezed(), T_pad, D), lambda b: (b, 0, 0)),
                pl.BlockSpec((pl.Squeezed(), S_pad, D), lambda b: (b, 0, 0)),
                pl.BlockSpec((pl.Squeezed(), 1, S_pad), lambda b: (b, 0, 0)),
            ],
            out_specs=pl.BlockSpec((pl.Squeezed(), T_pad, D),
                                   lambda b: (b, 0, 0)),
        ),
        compiler_params=pltpu.CompilerParams(
            dimension_semantics=("parallel",),
            vmem_limit_bytes=48 * 1024 * 1024,
        ),
        cost_estimate=attn_cost,
    )(queries, enc, mask)

    # Fold batch into the M dimension (layout-preserving reshape).
    ctx_2d = ctx.reshape(M, D)

    # --- Pass 2: vocab projection, grid over vocab tiles ----------------------
    proj_cost = pl.CostEstimate(
        flops=int(2 * M * D * V_pad),
        transcendentals=0,
        bytes_accessed=int(2 * M * D + 2 * D * V_pad + 4 * M * V_pad))

    logits = pl.pallas_call(
        _projection_kernel,
        out_shape=jax.ShapeDtypeStruct((M, V_pad), jnp.float32),
        grid_spec=pltpu.PrefetchScalarGridSpec(
            num_scalar_prefetch=0,
            grid=(n_vtiles,),
            in_specs=[
                # ctx: same block index every step -> resident, one DMA total.
                pl.BlockSpec((M, D), lambda j: (0, 0)),
                # w_out: (D, tn) tiles, streamed over HBM exactly once.
                pl.BlockSpec((D, tn), lambda j: (0, j)),
            ],
            out_specs=pl.BlockSpec((M, tn), lambda j: (0, j)),
        ),
        compiler_params=pltpu.CompilerParams(
            # Vocab tiles are independent: both v7x TensorCores stream
            # disjoint halves of w_out.
            dimension_semantics=("parallel",),
            vmem_limit_bytes=48 * 1024 * 1024,
        ),
        cost_estimate=proj_cost,
    )(ctx_2d, w_out)

    logits = logits.reshape(B, T_pad, V_pad)
    # NOTE: with tn dividing round_up(V, 128) the vocab padding is minimal; at
    # decode sizes this trailing slice is cheap (consumer could also index
    # lazily into the padded logits to avoid it entirely).
    return logits[:, :T, :V]


def _reference_forward(prev_output_tokens, encoder_out, encoder_padding_mask,
                       params):
    """Pure-JAX reference mirroring the kernel's bf16-input / f32-accum precision."""
    q = jnp.take(params["embed"], prev_output_tokens, axis=0).astype(jnp.bfloat16)
    k = encoder_out.astype(jnp.bfloat16)
    d = q.shape[-1]
    scores = jnp.einsum("btd,bsd->bts", q, k,
                        preferred_element_type=jnp.float32) / math.sqrt(d)
    scores = jnp.where(encoder_padding_mask[:, None, :], -1e30, scores)
    attn = jax.nn.softmax(scores, axis=-1)
    ctx = jnp.einsum("bts,bsd->btd", attn.astype(jnp.bfloat16), k,
                     preferred_element_type=jnp.float32)
    return jnp.einsum("btd,dv->btv", ctx.astype(jnp.bfloat16),
                      params["w_out"].astype(jnp.bfloat16),
                      preferred_element_type=jnp.float32)


if __name__ == "__main__":
    # Small shapes consistent with a decoder forward (VOCAB=256 with tn=128
    # exercises the vocab-tile grid axis: 2 projection tiles).
    B, T, S, D, VOCAB = 2, 8, 8, 32, 256

    key = jax.random.PRNGKey(0)
    k_emb, k_wout, k_tok, k_enc = jax.random.split(key, 4)

    params = {
        "embed": jax.random.normal(k_emb, (VOCAB, D), dtype=jnp.float32) * 0.02,
        "w_out": jax.random.normal(k_wout, (D, VOCAB), dtype=jnp.float32) * 0.02,
    }

    prev_output_tokens = jax.random.randint(k_tok, (B, T), 0, VOCAB,
                                            dtype=jnp.int32)
    encoder_out = jax.random.normal(k_enc, (B, S, D), dtype=jnp.float32)
    # Pad the tail of the second batch element's source sequence.
    src_lengths = jnp.array([S, S - 3], dtype=jnp.int32)
    encoder_padding_mask = (jnp.arange(S)[None, :] >= src_lengths[:, None])  # (B, S) bool

    logits = incremental_decoder_forward(prev_output_tokens, encoder_out,
                                         encoder_padding_mask, params, tn=128)
    jax.block_until_ready(logits)

    ref = _reference_forward(prev_output_tokens, encoder_out,
                             encoder_padding_mask, params)
    assert logits.shape == (B, T, VOCAB)
    assert jnp.allclose(logits, ref, atol=1e-2, rtol=1e-2), "mismatch vs reference"

    print("KERNEL_OK")
</pallas_src>

<mosaic_0001>
module attributes {stable_mosaic.version = 11 : i64} {
  func.func @_attention_kernel(%arg0: i32, %arg1: memref<1x16x32xbf16, #tpu.memory_space<vmem>>, %arg2: memref<1x128x32xbf16, #tpu.memory_space<vmem>>, %arg3: memref<1x1x128xf32, #tpu.memory_space<vmem>>, %arg4: memref<1x16x32xbf16, #tpu.memory_space<vmem>>) attributes {dimension_semantics = [#tpu.dimension_semantics<parallel>], iteration_bounds = array<i64: 2>, scalar_prefetch = 0 : i64, scratch_operands = 0 : i64, tpu.core_type = #tpu.core_type<tc>, window_params = [{transform_indices = @transform_0, window_bounds = array<i64: 1, 16, 32>}, {transform_indices = @transform_1, window_bounds = array<i64: 1, 128, 32>}, {transform_indices = @transform_2, window_bounds = array<i64: 1, 1, 128>}, {transform_indices = @transform_3, window_bounds = array<i64: 1, 16, 32>}]} {
    %c0 = arith.constant 0 : index
    %c0_0 = arith.constant 0 : index
    %c0_1 = arith.constant 0 : index
    %0 = vector.load %arg1[%c0, %c0_0, %c0_1] : memref<1x16x32xbf16, #tpu.memory_space<vmem>>, vector<1x16x32xbf16>
    %1 = vector.shape_cast %0 : vector<1x16x32xbf16> to vector<16x32xbf16>
    %c0_2 = arith.constant 0 : index
    %c0_3 = arith.constant 0 : index
    %c0_4 = arith.constant 0 : index
    %2 = vector.load %arg2[%c0_2, %c0_3, %c0_4] : memref<1x128x32xbf16, #tpu.memory_space<vmem>>, vector<1x128x32xbf16>
    %3 = vector.shape_cast %2 : vector<1x128x32xbf16> to vector<128x32xbf16>
    %cst = arith.constant dense<0.000000e+00> : vector<16x128xf32>
    %4 = tpu.matmul %1, %3, %cst {dimension_numbers = #tpu.dot_dimension_numbers<[1], [1], [0], [0], [0, 0, 1, 0], [], []>} : vector<16x32xbf16>, vector<128x32xbf16>, vector<16x128xf32> -> vector<16x128xf32>
    %cst_5 = arith.constant 0.176776692 : f32
    %5 = vector.broadcast %cst_5 : f32 to vector<16x128xf32>
    %6 = arith.mulf %4, %5 : vector<16x128xf32>
    %c0_6 = arith.constant 0 : index
    %c0_7 = arith.constant 0 : index
    %c0_8 = arith.constant 0 : index
    %7 = vector.load %arg3[%c0_6, %c0_7, %c0_8] : memref<1x1x128xf32, #tpu.memory_space<vmem>>, vector<1x1x128xf32>
    %8 = vector.shape_cast %7 : vector<1x1x128xf32> to vector<1x128xf32>
    %cst_9 = arith.constant 5.000000e-01 : f32
    %9 = vector.broadcast %cst_9 : f32 to vector<1x128xf32>
    %10 = arith.cmpf ogt, %8, %9 : vector<1x128xf32>
    %cst_10 = arith.constant -1.000000e+30 : f32
    %11 = vector.shape_cast %10 : vector<1x128xi1> to vector<1x128xi1>
    %12 = vector.broadcast %11 : vector<1x128xi1> to vector<16x128xi1>
    %13 = vector.broadcast %cst_10 : f32 to vector<16x128xf32>
    %14 = arith.select %12, %13, %6 : vector<16x128xi1>, vector<16x128xf32>
    %cst_11 = arith.constant dense<0xFF800000> : vector<16xf32>
    %15 = vector.multi_reduction <maximumf>, %14, %cst_11 [1] : vector<16x128xf32> to vector<16xf32>
    %16 = vector.shape_cast %15 : vector<16xf32> to vector<16x1xf32>
    %17 = vector.broadcast %16 : vector<16x1xf32> to vector<16x128xf32>
    %18 = arith.subf %14, %17 : vector<16x128xf32>
    %19 = math.exp %18 : vector<16x128xf32>
    %cst_12 = arith.constant dense<0.000000e+00> : vector<16xf32>
    %20 = vector.multi_reduction <add>, %19, %cst_12 [1] : vector<16x128xf32> to vector<16xf32>
    %21 = vector.shape_cast %20 : vector<16xf32> to vector<16x1xf32>
    %22 = tpu.reciprocal %21 {approx = true} : vector<16x1xf32> -> vector<16x1xf32>
    %23 = vector.broadcast %22 : vector<16x1xf32> to vector<16x128xf32>
    %24 = arith.mulf %19, %23 : vector<16x128xf32>
    %25 = arith.truncf %24 : vector<16x128xf32> to vector<16x128xbf16>
    %cst_13 = arith.constant dense<0.000000e+00> : vector<16x32xf32>
    %26 = tpu.matmul %25, %3, %cst_13 {dimension_numbers = #tpu.dot_dimension_numbers<[1], [0], [0], [1], [0, 0, 1, 1], [], []>} : vector<16x128xbf16>, vector<128x32xbf16>, vector<16x32xf32> -> vector<16x32xf32>
    %27 = arith.truncf %26 : vector<16x32xf32> to vector<16x32xbf16>
    %c0_14 = arith.constant 0 : index
    %c0_15 = arith.constant 0 : index
    %c0_16 = arith.constant 0 : index
    %28 = vector.load %arg4[%c0_14, %c0_15, %c0_16] : memref<1x16x32xbf16, #tpu.memory_space<vmem>>, vector<1x16x32xbf16>
    %29 = vector.shape_cast %28 : vector<1x16x32xbf16> to vector<16x32xbf16>
    %30 = vector.shape_cast %27 : vector<16x32xbf16> to vector<1x16x32xbf16>
    tpu.vector_store %arg4[%c0_14, %c0_15, %c0_16], %30 {strides = array<i32>} : memref<1x16x32xbf16, #tpu.memory_space<vmem>>, vector<1x16x32xbf16>,
    return
  }
  func.func @transform_0(%arg0: i32) -> (i32, i32, i32) {
    %c0_i32 = arith.constant 0 : i32
    %c0_i32_0 = arith.constant 0 : i32
    %c0_i32_1 = arith.constant 0 : i32
    return %arg0, %c0_i32, %c0_i32_0 : i32, i32, i32
  }
  func.func @transform_1(%arg0: i32) -> (i32, i32, i32) {
    %c0_i32 = arith.constant 0 : i32
    %c0_i32_0 = arith.constant 0 : i32
    %c0_i32_1 = arith.constant 0 : i32
    return %arg0, %c0_i32, %c0_i32_0 : i32, i32, i32
  }
  func.func @transform_2(%arg0: i32) -> (i32, i32, i32) {
    %c0_i32 = arith.constant 0 : i32
    %c0_i32_0 = arith.constant 0 : i32
    %c0_i32_1 = arith.constant 0 : i32
    return %arg0, %c0_i32, %c0_i32_0 : i32, i32, i32
  }
  func.func @transform_3(%arg0: i32) -> (i32, i32, i32) {
    %c0_i32 = arith.constant 0 : i32
    %c0_i32_0 = arith.constant 0 : i32
    %c0_i32_1 = arith.constant 0 : i32
    return %arg0, %c0_i32, %c0_i32_0 : i32, i32, i32
  }
}

</mosaic_0001>

<llo_original>
// kernel: tpu_custom_call.1
$region0: #{tpu_custom_call.1}
  #allocation0 [shape = 'u32[]', space=smem, size = 0x4, offset = 0x4, fixed_abs, tag = 'smem constant byte address 0x4 - core index']
  #allocation1 [shape = 'u32[72,128]{1,0:T(1,128)}', space=vmem, size = 0x9000, scoped, tag = 'internal scratch']
  %s0 = inlined_call_operand.vmem [shape: bf16[2,16,32], index: 0, kind: input, shape index: {}]
  %s1 = inlined_call_operand.vmem [shape: bf16[2,128,32], index: 1, kind: input, shape index: {}]
  %s2 = inlined_call_operand.vmem [shape: f32[2,1,128], index: 2, kind: input, shape index: {}]
  %s3 = inlined_call_operand.hbm [shape: bf16[2,16,32], index: 3, kind: output, shape index: {}]
  %s4 = sld [smem:[#allocation0]]
  $region45: #{tpu_custom_call.1} parent=0
    _
  %s6 = ssub.s32 1, %s4
  %s7 = scalar_select 0, %s6, %s4
  $region1: #{tpu_custom_call.1} parent=0
    #allocation2 [shape = 'u8[8192]{0}', space=vmem, size = 0x2000, scoped, tag = 'output window, operand 0']
    #allocation3 [shape = 's32[2]{0}', space=sflag, size = 0x8, scoped, tag = 'scoped memory for tpu_custom_call.1']
    %8 = vsyncpa [#allocation3], 0
    %s9 = scalar_lea.sflag [#allocation3], 1
    %10 = vsyncpa %s9, 0
    loop: start=0, step=1, limit=4
    $region2: #{tpu_custom_call.1} parent=1 // loop_pre_header
      _
    $region3: #{tpu_custom_call.1} parent=1 // loop_header
      %s12 = sphi 0, %s16
      %p13 = scmp.ge.s32.totalorder %s12, 4
      %s22 = sphi 0, %s24
      %s25 = sphi 0, %s22
      %s26 = sphi 0, %s25
      %s42 = sphi 0, %s26
      %s48 = sphi 0, %s50
      %s51 = sphi 0, %s48
      %s52 = sphi 0, %s51
      %s68 = sphi 0, %s52
      %s74 = sphi 0, %s76
      %s77 = sphi 0, %s74
      %s78 = sphi 0, %s77
      %s94 = sphi 0, %s78
      %s100 = sphi 0, %s102
      %s103 = sphi 0, %s100
      %s104 = sphi 0, %s103
      %s120 = sphi 0, %s104
    $region4: #{tpu_custom_call.1} parent=1 // loop_header_branch
      %15 = sbr.rel (%p13) target = $region8
    $region5: #{tpu_custom_call.1} parent=1 // loop_body
      %s17 = ssub.s32 %s12, 1
      %s18 = ssub.s32 %s12, 2
      %s19 = sadd.s32 %s12, 1
      %s20 = ssub.s32 %s12, %s19
      %p21 = scmp.eq.s32.totalorder %s20, 0
      %s23 = sadd.s32 %s22, 1
      %s24 = scalar_select %p21, %s22, %s23
      %p27 = pneg %p21
      %p28 = scmp.eq.s32.totalorder %s12, 1
      %p29 = por %p27, %p28
      %p30 = scmp.ne.s32.totalorder %s22, %s25
      %p31 = scmp.eq.s32.totalorder %s12, 0
      %p32 = por %p30, %p31
      %p33 = scmp.ne.s32.totalorder %s22, %s25
      %p34 = scmp.eq.s32.totalorder %s17, 1
      %p35 = por %p33, %p34
      %p36 = scmp.ne.s32.totalorder %s25, %s26
      %p37 = scmp.eq.s32.totalorder %s17, 0
      %p38 = por %p36, %p37
      %p39 = scmp.ne.s32.totalorder %s25, %s26
      %p40 = scmp.eq.s32.totalorder %s18, 1
      %p41 = por %p39, %p40
      %p43 = scmp.ne.s32.totalorder %s26, %s42
      %p44 = scmp.eq.s32.totalorder %s18, 0
      %p45 = por %p43, %p44
      %s46 = ssub.s32 %s12, %s19
      %p47 = scmp.eq.s32.totalorder %s46, 0
      %s49 = sadd.s32 %s48, 1
      %s50 = scalar_select %p47, %s48, %s49
      %p53 = pneg %p47
      %p54 = scmp.eq.s32.totalorder %s12, 1
      %p55 = por %p53, %p54
      %p56 = scmp.ne.s32.totalorder %s48, %s51
      %p57 = scmp.eq.s32.totalorder %s12, 0
      %p58 = por %p56, %p57
      %p59 = scmp.ne.s32.totalorder %s48, %s51
      %p60 = scmp.eq.s32.totalorder %s17, 1
      %p61 = por %p59, %p60
      %p62 = scmp.ne.s32.totalorder %s51, %s52
      %p63 = scmp.eq.s32.totalorder %s17, 0
      %p64 = por %p62, %p63
      %p65 = scmp.ne.s32.totalorder %s51, %s52
      %p66 = scmp.eq.s32.totalorder %s18, 1
      %p67 = por %p65, %p66
      %p69 = scmp.ne.s32.totalorder %s52, %s68
      %p70 = scmp.eq.s32.totalorder %s18, 0
      %p71 = por %p69, %p70
      %s72 = ssub.s32 %s12, %s19
      %p73 = scmp.eq.s32.totalorder %s72, 0
      %s75 = sadd.s32 %s74, 1
      %s76 = scalar_select %p73, %s74, %s75
      %p79 = pneg %p73
      %p80 = scmp.eq.s32.totalorder %s12, 1
      %p81 = por %p79, %p80
      %p82 = scmp.ne.s32.totalorder %s74, %s77
      %p83 = scmp.eq.s32.totalorder %s12, 0
      %p84 = por %p82, %p83
      %p85 = scmp.ne.s32.totalorder %s74, %s77
      %p86 = scmp.eq.s32.totalorder %s17, 1
      %p87 = por %p85, %p86
      %p88 = scmp.ne.s32.totalorder %s77, %s78
      %p89 = scmp.eq.s32.totalorder %s17, 0
      %p90 = por %p88, %p89
      %p91 = scmp.ne.s32.totalorder %s77, %s78
      %p92 = scmp.eq.s32.totalorder %s18, 1
      %p93 = por %p91, %p92
      %p95 = scmp.ne.s32.totalorder %s78, %s94
      %p96 = scmp.eq.s32.totalorder %s18, 0
      %p97 = por %p95, %p96
      %s98 = ssub.s32 %s12, %s19
      %p99 = scmp.eq.s32.totalorder %s98, 0
      %s101 = sadd.s32 %s100, 1
      %s102 = scalar_select %p99, %s100, %s101
      %p105 = pneg %p99
      %p106 = scmp.eq.s32.totalorder %s12, 1
      %p107 = por %p105, %p106
      %p108 = scmp.ne.s32.totalorder %s100, %s103
      %p109 = scmp.eq.s32.totalorder %s12, 0
      %p110 = por %p108, %p109
      %p111 = scmp.ne.s32.totalorder %s100, %s103
      %p112 = scmp.eq.s32.totalorder %s17, 1
      %p113 = por %p111, %p112
      %p114 = scmp.ne.s32.totalorder %s103, %s104
      %p115 = scmp.eq.s32.totalorder %s17, 0
      %p116 = por %p114, %p115
      %p117 = scmp.ne.s32.totalorder %s103, %s104
      %p118 = scmp.eq.s32.totalorder %s18, 1
      %p119 = por %p117, %p118
      %p121 = scmp.ne.s32.totalorder %s104, %s120
      %p122 = scmp.eq.s32.totalorder %s18, 0
      %p123 = por %p121, %p122
      %p124 = scmp.le.s32.totalorder 1, %s12
      %p125 = scmp.lt.s32.totalorder %s12, 3
      %p126 = pnand %p124, %p125
      %p127 = pneg %p126
      // Predicated region
      $region9: #{tpu_custom_call.1} parent=5 // pred_check
        _
      $region10: #{tpu_custom_call.1} parent=5 // pred_check_branch
        %129 = sbr.rel (%p126) target = $region12
      $region11: #{tpu_custom_call.1} parent=5 // pred_region
        %s130 = ssub.s32 %s12, 1
      $region12: #{tpu_custom_call.1} parent=5 // pred_fallthru
        _
      %p131 = scmp.lt.s32.totalorder %s12, 2
      // Predicated region
      $region13: #{tpu_custom_call.1} parent=5 // pred_check
        %p132 = pneg %p131
      $region14: #{tpu_custom_call.1} parent=5 // pred_check_branch
        %134 = sbr.rel (%p132) target = $region16
      $region15: #{tpu_custom_call.1} parent=5 // pred_region
        // Predicated region
        $region17: #{tpu_custom_call.1} parent=15 // pred_check
          %p135 = pneg %p32
        $region18: #{tpu_custom_call.1} parent=15 // pred_check_branch
          %137 = sbr.rel (%p135) target = $region20
        $region19: #{tpu_custom_call.1} parent=15 // pred_region
          %p138 = scmp.lt.s32.totalorder %s12, 1
          %s139 = scalar_select %p138, %s12, 1
          %s140 = smul.addr %s139, 2
          %s141 = smul.addr %s140, 4
          %s142 = scalar_lea.vmem %s0, %s141
        $region20: #{tpu_custom_call.1} parent=15 // pred_fallthru
          _
        // Predicated region
        $region21: #{tpu_custom_call.1} parent=15 // pred_check
          %p143 = pneg %p58
        $region22: #{tpu_custom_call.1} parent=15 // pred_check_branch
          %145 = sbr.rel (%p143) target = $region24
        $region23: #{tpu_custom_call.1} parent=15 // pred_region
          %p146 = scmp.lt.s32.totalorder %s12, 1
          %s147 = scalar_select %p146, %s12, 1
          %s148 = smul.addr %s147, 16
          %s149 = smul.addr %s148, 4
          %s150 = scalar_lea.vmem %s1, %s149
        $region24: #{tpu_custom_call.1} parent=15 // pred_fallthru
          _
        // Predicated region
        $region25: #{tpu_custom_call.1} parent=15 // pred_check
          %p151 = pneg %p84
        $region26: #{tpu_custom_call.1} parent=15 // pred_check_branch
          %153 = sbr.rel (%p151) target = $region28
        $region27: #{tpu_custom_call.1} parent=15 // pred_region
          %p154 = scmp.lt.s32.totalorder %s12, 1
          %s155 = scalar_select %p154, %s12, 1
          %s156 = scalar_lea.vmem %s2, %s155
        $region28: #{tpu_custom_call.1} parent=15 // pred_fallthru
          _
      $region16: #{tpu_custom_call.1} parent=5 // pred_fallthru
        _
      %p157 = scmp.le.s32.totalorder 1, %s12
      %p158 = scmp.lt.s32.totalorder %s12, 3
      %p159 = pnand %p157, %p158
      %p160 = pneg %p159
      // Predicated region
      $region29: #{tpu_custom_call.1} parent=5 // pred_check
        _
      $region30: #{tpu_custom_call.1} parent=5 // pred_check_branch
        %162 = sbr.rel (%p159) target = $region32
      $region31: #{tpu_custom_call.1} parent=5 // pred_region
        %s163 = ssub.s32 %s12, 1
        %p164 = scmp.lt.s32.totalorder %s17, 1
        %s165 = scalar_select %p164, %s17, 1
        %s166 = smul.addr %s165, 2
        %s167 = smul.addr %s166, 4
        %s168 = scalar_lea.vmem %s0, %s167
        %p169 = pneg %p38
        %p170 = pneg %p35
        %p171 = scmp.lt.s32.totalorder %s17, 1
        %s172 = scalar_select %p171, %s17, 1
        %s173 = smul.addr %s172, 16
        %s174 = smul.addr %s173, 4
        %s175 = scalar_lea.vmem %s1, %s174
        %p176 = pneg %p64
        %p177 = pneg %p61
        %p178 = scmp.lt.s32.totalorder %s17, 1
        %s179 = scalar_select %p178, %s17, 1
        %s180 = scalar_lea.vmem %s2, %s179
        %p181 = pneg %p90
        %p182 = pneg %p87
        %p183 = pneg %p116
        %p184 = pneg %p113
        %s185 = sand.u32 %s103, 1
        %s186 = scalar_lea.sflag [#allocation3], %s185
        %s187 = sand.u32 %s103, 1
        %s188 = smul.addr %s187, 8
        %s189 = scalar_lea.vmem [#allocation2], %s188
        %p190 = scmp.lt.s32.totalorder %s17, 1
        %s191 = scalar_select %p190, %s17, 1
        %s192 = smul.addr %s191, 2
        %s193 = smul.addr %s192, 4
        %s194 = scalar_lea.vmem %s0, %s193
        %p195 = scmp.lt.s32.totalorder %s17, 1
        %s196 = scalar_select %p195, %s17, 1
        %s197 = smul.addr %s196, 16
        %s198 = smul.addr %s197, 4
        %s199 = scalar_lea.vmem %s1, %s198
        %p200 = scmp.lt.s32.totalorder %s17, 1
        %s201 = scalar_select %p200, %s17, 1
        %s202 = scalar_lea.vmem %s2, %s201
        %v203 = vld [vmem:[%s194] sm:$0xf]
        %v204 = vld [vmem:[%s194 + $0x4] sm:$0xf]
        %v205 = vld [vmem:[%s199] sm:$0xf]
        %v206 = vld [vmem:[%s199 + $0x4] sm:$0xf]
        %v207 = vld [vmem:[%s199 + $0x8] sm:$0xf]
        %v208 = vld [vmem:[%s199 + $0xc] sm:$0xf]
        %v209 = vld [vmem:[%s199 + $0x10] sm:$0xf]
        %v210 = vld [vmem:[%s199 + $0x14] sm:$0xf]
        %v211 = vld [vmem:[%s199 + $0x18] sm:$0xf]
        %v212 = vld [vmem:[%s199 + $0x1c] sm:$0xf]
        %v213 = vld [vmem:[%s199 + $0x20] sm:$0xf]
        %v214 = vld [vmem:[%s199 + $0x24] sm:$0xf]
        %v215 = vld [vmem:[%s199 + $0x28] sm:$0xf]
        %v216 = vld [vmem:[%s199 + $0x2c] sm:$0xf]
        %v217 = vld [vmem:[%s199 + $0x30] sm:$0xf]
        %v218 = vld [vmem:[%s199 + $0x34] sm:$0xf]
        %v219 = vld [vmem:[%s199 + $0x38] sm:$0xf]
        %v220 = vld [vmem:[%s199 + $0x3c] sm:$0xf]
        %v223 = vunpack.c.l.b16 %v203
        %v224 = vunpack.c.l.b16 %v204
        %v225 = vpack.c.b16 %v224, %v223
        %v242 = vunpack.c.l.b16 %v205
        %v243 = vunpack.c.l.b16 %v206
        %v244 = vunpack.c.l.b16 %v207
        %v245 = vunpack.c.l.b16 %v208
        %v246 = vunpack.c.l.b16 %v209
        %v247 = vunpack.c.l.b16 %v210
        %v248 = vunpack.c.l.b16 %v211
        %v249 = vunpack.c.l.b16 %v212
        %v250 = vunpack.c.l.b16 %v213
        %v251 = vunpack.c.l.b16 %v214
        %v252 = vunpack.c.l.b16 %v215
        %v253 = vunpack.c.l.b16 %v216
        %v254 = vunpack.c.l.b16 %v217
        %v255 = vunpack.c.l.b16 %v218
        %v256 = vunpack.c.l.b16 %v219
        %v257 = vunpack.c.l.b16 %v220
        %v258 = vpack.c.b16 %v243, %v242
        %v259 = vpack.c.b16 %v245, %v244
        %v260 = vpack.c.b16 %v247, %v246
        %v261 = vpack.c.b16 %v249, %v248
        %v262 = vpack.c.b16 %v251, %v250
        %v263 = vpack.c.b16 %v253, %v252
        %v264 = vpack.c.b16 %v255, %v254
        %v265 = vpack.c.b16 %v257, %v256
        %vm266 = vcmask 261120
        %v268 = vsel %vm266, %v225, 0
        %v271 = vsel %vm266, %v258, 0
        %v274 = vsel %vm266, %v259, 0
        %v277 = vsel %vm266, %v260, 0
        %v280 = vsel %vm266, %v261, 0
        %v283 = vsel %vm266, %v262, 0
        %v286 = vsel %vm266, %v263, 0
        %v289 = vsel %vm266, %v264, 0
        %v292 = vsel %vm266, %v265, 0
        %294 = vmatpush.bf16.xpose.msra.mxu0 %v292
        %295 = vmatpush.bf16.xpose.msra.mxu0 %v289
        %296 = vmatpush.bf16.xpose.msra.mxu0 %v286
        %297 = vmatpush.bf16.xpose.msra.mxu0 %v283
        %298 = vmatpush.bf16.xpose.msra.mxu0 %v280
        %299 = vmatpush.bf16.xpose.msra.mxu0 %v277
        %300 = vmatpush.bf16.xpose.msra.mxu0 %v274
        %301 = vmatpush.bf16.xpose.msra.mxu0 %v271
        %302 = vmatmul.bf16.gmra.mxu0 %v268
        %v303 = vpop.f32.mrf.mxu0
        %v304 = vadd.f32 0.0, %v303
        %v305 = vpop.f32.mrf.mxu0
        %v306 = vadd.f32 0.0, %v305
        %307 = vdwg.mxu0
        %v308 = vmul.f32 %v304, 0.17677669
        %v309 = vmul.f32 %v306, 0.17677669
        %v310 = vld [vmem:[%s202] sm:$0x1]
        %vm311 = vcmp.gt.f32.partialorder %v310, 0.5
        %v312 = vsel %vm311, 1, 0
        %v313 = vperm.slane %v312, 0
        %vm314 = vcmp.eq.s32.totalorder %v313, 1
        %v315 = vsel %vm314, -1e+30, %v308
        %v316 = vsel %vm314, -1e+30, %v309
        %317 = vmax.xlane.f32.xlu0 %v315
        %v318 = vpop.xlane.xlu0 %317
        %319 = vmax.xlane.f32.xlu0 %v316
        %v320 = vpop.xlane.xlu0 %319
        %v321 = vsub.f32 %v315, %v318
        %v322 = vsub.f32 %v316, %v320
        %v323 = vmul.f32 %v321, 1.442695
        %v324 = vpow.pop %v323
        %v325 = vmul.f32 %v322, 1.442695
        %v326 = vpow.pop %v325
        %327 = vadd.xlane.f32.xlu0 %v324
        %v328 = vpop.xlane.xlu0 %327
        %329 = vadd.xlane.f32.xlu0 %v326
        %v330 = vpop.xlane.xlu0 %329
        %v331 = vrcp.pop %v328
        %v332 = vrcp.pop %v330
        %v333 = vmul.f32 %v324, %v331
        %v334 = vmul.f32 %v326, %v332
        %v335 = vpack.c.bf16 %v334, %v333
        %344 = vmatpush.bf16.msra.mxu0 %v265
        %345 = vmatpush.bf16.msra.mxu0 %v264
        %346 = vmatpush.bf16.msra.mxu0 %v263
        %347 = vmatpush.bf16.msra.mxu0 %v262
        %348 = vmatpush.bf16.msra.mxu0 %v261
        %349 = vmatpush.bf16.msra.mxu0 %v260
        %350 = vmatpush.bf16.msra.mxu0 %v259
        %351 = vmatpush.bf16.msra.mxu0 %v258
        %352 = vmatmul.bf16.gmra.mxu0 %v335
        %v353 = vpop.f32.mrf.mxu0
        %v354 = vadd.f32 0.0, %v353
        %v355 = vpop.f32.mrf.mxu0
        %v356 = vadd.f32 0.0, %v355
        %357 = vdwg.mxu0
        %v358 = vpack.c.bf16 %v354, %v354
        %v359 = vpack.c.bf16 %v356, %v356
        %vm360 = vcmask 257024
        %361 = vst.msk [vmem:[%s189] sm:$0xf] %vm360, %v358
        %362 = vst.msk [vmem:[%s189 + $0x4] sm:$0xf] %vm360, %v359
        %s363 = sand.u32 %s103, 1
        %s364 = scalar_lea.sflag [#allocation3], %s363
        %s365 = sand.u32 %s103, 1
        %s366 = smul.addr %s365, 8
        %s367 = scalar_lea.vmem [#allocation2], %s366
        // Predicated region
        $region33: #{tpu_custom_call.1} parent=31 // pred_check
          %p368 = pneg %p113
        $region34: #{tpu_custom_call.1} parent=31 // pred_check_branch
          %370 = sbr.rel (%p368) target = $region36
        $region35: #{tpu_custom_call.1} parent=31 // pred_region
          %372 = vsyncadd %s364, 0
          %s373 = smul.addr %s17, 2
          %s374 = smul.addr %s373, 4
          %s375 = scalar_lea.hbm %s3, %s374
          %s376 = sshll.u32 %s367, 4
          %s377 = int_to_ptr.vmem [resolvable:$true] %s376
          %s378 = sshll.u32 %s375, 4
          %s379 = int_to_ptr.hbm [resolvable:$true] %s378
          %384 = dma.vmem_to_hbm [thread:$0]  %s377, 128, %s379, %s364, 64, 64, 4
        $region36: #{tpu_custom_call.1} parent=31 // pred_fallthru
          _
      $region32: #{tpu_custom_call.1} parent=5 // pred_fallthru
        _
      %p385 = scmp.le.s32.totalorder 2, %s12
      // Predicated region
      $region37: #{tpu_custom_call.1} parent=5 // pred_check
        %p386 = pneg %p385
      $region38: #{tpu_custom_call.1} parent=5 // pred_check_branch
        %388 = sbr.rel (%p386) target = $region40
      $region39: #{tpu_custom_call.1} parent=5 // pred_region
        %s389 = ssub.s32 %s12, 2
        // Predicated region
        $region41: #{tpu_custom_call.1} parent=39 // pred_check
          %p390 = pneg %p119
        $region42: #{tpu_custom_call.1} parent=39 // pred_check_branch
          %392 = sbr.rel (%p390) target = $region44
        $region43: #{tpu_custom_call.1} parent=39 // pred_region
          %s393 = sand.u32 %s104, 1
          %s394 = scalar_lea.sflag [#allocation3], %s393
          %s395 = sand.u32 %s104, 1
          %s396 = smul.addr %s395, 8
          %s397 = scalar_lea.vmem [#allocation2], %s396
          %399 = dma.done %s394, 128
        $region44: #{tpu_custom_call.1} parent=39 // pred_fallthru
          _
      $region40: #{tpu_custom_call.1} parent=5 // pred_fallthru
        _
    $region6: #{tpu_custom_call.1} parent=1 // loop_footer
      %s16 = sadd.s32 1, %s12
    $region7: #{tpu_custom_call.1} parent=1 // loop_footer_branch
      %11 = sbr.rel target = $region3
    $region8: #{tpu_custom_call.1} parent=1 // loop_exit
      _
    %400 = vsyncpa [#allocation3], 1
    %s401 = scalar_lea.sflag [#allocation3], 1
    %402 = vsyncpa %s401, 1

</llo_original>
